<compile_context>
chip_gen: v6e
topology: v6e:2x2x1
jax: 0.10.0
libtpu: 0.0.40
codegen_flags: <defaults>
</compile_context>

<pallas_src>
import math
import functools

import jax
import jax.numpy as jnp
from jax.experimental import pallas as pl
from jax.experimental.pallas import tpu as pltpu


def _round_up(x, m):
    return ((x + m - 1) // m) * m


# ----------------------------- kernels ---------------------------------------
def _complex_linear_kernel(xr_ref, xi_ref, wr_ref, wi_ref, br_ref, bi_ref,
                           or_ref, oi_ref, accr_ref, acci_ref):
    """K-reduction variant: grid = (M, N, K), f32 VMEM accumulators."""
    k = pl.program_id(2)

    @pl.when(k == 0)
    def _():
        accr_ref[...] = jnp.zeros_like(accr_ref)
        acci_ref[...] = jnp.zeros_like(acci_ref)

    xr = xr_ref[...]
    xi = xi_ref[...]
    wr = wr_ref[...]
    wi = wi_ref[...]
    accr_ref[...] += (jnp.dot(xr, wr, preferred_element_type=jnp.float32)
                      - jnp.dot(xi, wi, preferred_element_type=jnp.float32))
    acci_ref[...] += (jnp.dot(xr, wi, preferred_element_type=jnp.float32)
                      + jnp.dot(xi, wr, preferred_element_type=jnp.float32))

    @pl.when(k == pl.num_programs(2) - 1)
    def _():
        or_ref[...] = (accr_ref[...] + br_ref[...]).astype(or_ref.dtype)
        oi_ref[...] = (acci_ref[...] + bi_ref[...]).astype(oi_ref.dtype)


def _complex_linear_kernel_1k(xr_ref, xi_ref, wr_ref, wi_ref, br_ref, bi_ref,
                              or_ref, oi_ref):
    """Single-K-block fast path: grid = (M, N), no scratch accumulators."""
    xr = xr_ref[...]
    xi = xi_ref[...]
    wr = wr_ref[...]
    wi = wi_ref[...]
    hr = (jnp.dot(xr, wr, preferred_element_type=jnp.float32)
          - jnp.dot(xi, wi, preferred_element_type=jnp.float32))
    hi = (jnp.dot(xr, wi, preferred_element_type=jnp.float32)
          + jnp.dot(xi, wr, preferred_element_type=jnp.float32))
    or_ref[...] = (hr + br_ref[...]).astype(or_ref.dtype)
    oi_ref[...] = (hi + bi_ref[...]).astype(oi_ref.dtype)


# ----------------------------- wrapper ----------------------------------------
@functools.partial(jax.jit, static_argnames=("tm", "tn", "tk"))
def complex_linear(x_real, x_imag, w_real, w_imag, b_real, b_imag,
                   *, tm=512, tn=512, tk=512):
    M, K = x_real.shape
    K_w, N = w_real.shape
    assert K == K_w, "in_features mismatch"
    out_dtype = x_real.dtype
    itemsize = jnp.dtype(out_dtype).itemsize
    sublane = 8 * max(1, 4 // itemsize)        # 8 for f32, 16 for bf16, 32 for int8

    # ---- effective tile sizes + padded dims (size-robust, (8,128)-legal) ----
    if M >= tm:
        Mp, tm_e = _round_up(M, tm), tm
    else:
        Mp = _round_up(M, sublane)             # full-dim block, sublane aligned
        tm_e = Mp

    if N > tn:
        Np, tn_e = _round_up(N, tn), tn        # tn is a multiple of 128
    else:
        Np = _round_up(N, 128)                 # lane-dense output stores
        tn_e = Np

    if K > tk:
        Kp, tk_e = _round_up(K, tk), tk
    else:
        Kp, tk_e = K, K                        # block == full dim, no pad needed

    gm = Mp // tm_e
    # v7x has 2 TensorCores: make sure at least one *parallel* axis has >=2
    # blocks when M collapses to a single tile (only when lane-legal).
    if gm == 1 and Np // tn_e == 1 and Np >= 256 and Np % 256 == 0:
        tn_e = Np // 2
    gn = Np // tn_e
    nk = Kp // tk_e

    # ---- zero-pad up to tile multiples (no-op when already aligned) ---------
    def _pad2(a, rows, cols):
        pr, pc = rows - a.shape[0], cols - a.shape[1]
        if pr == 0 and pc == 0:
            return a
        return jnp.pad(a, ((0, pr), (0, pc)))

    xr = _pad2(x_real, Mp, Kp)
    xi = _pad2(x_imag, Mp, Kp)
    wr = _pad2(w_real, Kp, Np)
    wi = _pad2(w_imag, Kp, Np)
    br = _pad2(b_real.reshape(1, N), 1, Np)
    bi = _pad2(b_imag.reshape(1, N), 1, Np)

    # ---- VMEM budget (double-buffered in/out tiles + accumulators) ----------
    acc_bytes = (2 * tm_e * tn_e * 4) if nk > 1 else 0
    est = (2 * 2 * tm_e * tk_e * itemsize      # x_r, x_i tiles
           + 2 * 2 * tk_e * tn_e * itemsize    # W_r, W_i tiles
           + 2 * 2 * 1 * tn_e * itemsize       # biases
           + 2 * 2 * tm_e * tn_e * itemsize    # real/imag output tiles
           + acc_bytes)
    vmem_limit = int(min(max(2 * est, 16 * 1024 * 1024), 48 * 1024 * 1024))

    # ---- grid / specs --------------------------------------------------------
    if nk > 1:
        grid = (gm, gn, nk)
        in_specs = [
            pl.BlockSpec((tm_e, tk_e), lambda i, j, k: (i, k)),   # x_r
            pl.BlockSpec((tm_e, tk_e), lambda i, j, k: (i, k)),   # x_i
            pl.BlockSpec((tk_e, tn_e), lambda i, j, k: (k, j)),   # W_r
            pl.BlockSpec((tk_e, tn_e), lambda i, j, k: (k, j)),   # W_i
            pl.BlockSpec((1, tn_e), lambda i, j, k: (0, j)),      # b_r
            pl.BlockSpec((1, tn_e), lambda i, j, k: (0, j)),      # b_i
        ]
        out_specs = [pl.BlockSpec((tm_e, tn_e), lambda i, j, k: (i, j)),
                     pl.BlockSpec((tm_e, tn_e), lambda i, j, k: (i, j))]
        scratch = [pltpu.VMEM((tm_e, tn_e), jnp.float32),
                   pltpu.VMEM((tm_e, tn_e), jnp.float32)]
        kernel = _complex_linear_kernel
        dims = ("parallel", "parallel", "arbitrary")
    else:
        grid = (gm, gn)
        in_specs = [
            pl.BlockSpec((tm_e, tk_e), lambda i, j: (i, 0)),
            pl.BlockSpec((tm_e, tk_e), lambda i, j: (i, 0)),
            pl.BlockSpec((tk_e, tn_e), lambda i, j: (0, j)),
            pl.BlockSpec((tk_e, tn_e), lambda i, j: (0, j)),
            pl.BlockSpec((1, tn_e), lambda i, j: (0, j)),
            pl.BlockSpec((1, tn_e), lambda i, j: (0, j)),
        ]
        out_specs = [pl.BlockSpec((tm_e, tn_e), lambda i, j: (i, j)),
                     pl.BlockSpec((tm_e, tn_e), lambda i, j: (i, j))]
        scratch = []
        kernel = _complex_linear_kernel_1k
        dims = ("parallel", "parallel")

    out_r, out_i = pl.pallas_call(
        kernel,
        out_shape=(jax.ShapeDtypeStruct((Mp, Np), out_dtype),
                   jax.ShapeDtypeStruct((Mp, Np), out_dtype)),
        grid_spec=pltpu.PrefetchScalarGridSpec(
            num_scalar_prefetch=0,
            grid=grid,
            in_specs=in_specs,
            out_specs=out_specs,
            scratch_shapes=scratch),
        compiler_params=pltpu.CompilerParams(
            dimension_semantics=dims,
            vmem_limit_bytes=vmem_limit),
    )(xr, xi, wr, wi, br, bi)

    # padding slices off for free; imag is its own lane-dense array already
    return out_r[:M, :N], out_i[:M, :N]


# ----------------------------- init (matches init_weight) --------------------
def _xavier_uniform(key, shape, dtype=jnp.float32):
    fan_in, fan_out = shape
    limit = math.sqrt(6.0 / (fan_in + fan_out))
    return jax.random.uniform(key, shape, dtype, minval=-limit, maxval=limit)


def _bias_uniform(key, shape, dtype=jnp.float32):
    stdv = 1.0 / math.sqrt(shape[0])
    return jax.random.uniform(key, shape, dtype, minval=-stdv, maxval=stdv)


def _ref(x_real, x_imag, w_real, w_imag, b_real, b_imag):
    ref_r = x_real @ w_real - x_imag @ w_imag + b_real
    ref_i = x_real @ w_imag + x_imag @ w_real + b_imag
    return ref_r, ref_i


if __name__ == "__main__":
    key = jax.random.PRNGKey(0)

    # ---- case 1: module-default tiny shape (single-K fast path) -------------
    in_features, out_features, M = 32, 32, 8
    k_wr, k_wi, k_br, k_bi, k_xr, k_xi, key = jax.random.split(key, 7)
    w_real = _xavier_uniform(k_wr, (in_features, out_features))
    w_imag = _xavier_uniform(k_wi, (in_features, out_features))
    b_real = _bias_uniform(k_br, (out_features,))
    b_imag = _bias_uniform(k_bi, (out_features,))
    x_real = jax.random.normal(k_xr, (M, in_features), jnp.float32)
    x_imag = jax.random.normal(k_xi, (M, in_features), jnp.float32)

    out_r, out_i = complex_linear(x_real, x_imag, w_real, w_imag,
                                  b_real, b_imag)
    jax.block_until_ready((out_r, out_i))
    ref_r, ref_i = _ref(x_real, x_imag, w_real, w_imag, b_real, b_imag)
    assert out_r.shape == ref_r.shape and out_i.shape == ref_i.shape
    assert jnp.allclose(out_r, ref_r, atol=1e-4, rtol=1e-4)
    assert jnp.allclose(out_i, ref_i, atol=1e-4, rtol=1e-4)

    # ---- case 2: exercise K-reduction + multi-N-block path ------------------
    in_features, out_features, M = 256, 192, 24
    k_wr, k_wi, k_br, k_bi, k_xr, k_xi, key = jax.random.split(key, 7)
    w_real = _xavier_uniform(k_wr, (in_features, out_features))
    w_imag = _xavier_uniform(k_wi, (in_features, out_features))
    b_real = _bias_uniform(k_br, (out_features,))
    b_imag = _bias_uniform(k_bi, (out_features,))
    x_real = jax.random.normal(k_xr, (M, in_features), jnp.float32)
    x_imag = jax.random.normal(k_xi, (M, in_features), jnp.float32)

    out_r, out_i = complex_linear(x_real, x_imag, w_real, w_imag,
                                  b_real, b_imag, tk=128)
    jax.block_until_ready((out_r, out_i))
    ref_r, ref_i = _ref(x_real, x_imag, w_real, w_imag, b_real, b_imag)
    assert jnp.allclose(out_r, ref_r, atol=1e-4, rtol=1e-4)
    assert jnp.allclose(out_i, ref_i, atol=1e-4, rtol=1e-4)

    print("KERNEL_OK")
</pallas_src>

<mosaic_0001>
module attributes {stable_mosaic.version = 11 : i64} {
  func.func @_complex_linear_kernel_1k(%arg0: i32, %arg1: i32, %arg2: memref<8x32xf32, #tpu.memory_space<vmem>>, %arg3: memref<8x32xf32, #tpu.memory_space<vmem>>, %arg4: memref<32x128xf32, #tpu.memory_space<vmem>>, %arg5: memref<32x128xf32, #tpu.memory_space<vmem>>, %arg6: memref<1x128xf32, #tpu.memory_space<vmem>>, %arg7: memref<1x128xf32, #tpu.memory_space<vmem>>, %arg8: memref<8x128xf32, #tpu.memory_space<vmem>>, %arg9: memref<8x128xf32, #tpu.memory_space<vmem>>) attributes {dimension_semantics = [#tpu.dimension_semantics<parallel>, #tpu.dimension_semantics<parallel>], iteration_bounds = array<i64: 1, 1>, scalar_prefetch = 0 : i64, scratch_operands = 0 : i64, tpu.core_type = #tpu.core_type<tc>, window_params = [{transform_indices = @transform_0, window_bounds = array<i64: 8, 32>}, {transform_indices = @transform_1, window_bounds = array<i64: 8, 32>}, {transform_indices = @transform_2, window_bounds = array<i64: 32, 128>}, {transform_indices = @transform_3, window_bounds = array<i64: 32, 128>}, {transform_indices = @transform_4, window_bounds = array<i64: 1, 128>}, {transform_indices = @transform_5, window_bounds = array<i64: 1, 128>}, {transform_indices = @transform_6, window_bounds = array<i64: 8, 128>}, {transform_indices = @transform_7, window_bounds = array<i64: 8, 128>}]} {
    %c0 = arith.constant 0 : index
    %c0_0 = arith.constant 0 : index
    %0 = vector.load %arg2[%c0, %c0_0] : memref<8x32xf32, #tpu.memory_space<vmem>>, vector<8x32xf32>
    %c0_1 = arith.constant 0 : index
    %c0_2 = arith.constant 0 : index
    %1 = vector.load %arg3[%c0_1, %c0_2] : memref<8x32xf32, #tpu.memory_space<vmem>>, vector<8x32xf32>
    %c0_3 = arith.constant 0 : index
    %c0_4 = arith.constant 0 : index
    %2 = vector.load %arg4[%c0_3, %c0_4] : memref<32x128xf32, #tpu.memory_space<vmem>>, vector<32x128xf32>
    %c0_5 = arith.constant 0 : index
    %c0_6 = arith.constant 0 : index
    %3 = vector.load %arg5[%c0_5, %c0_6] : memref<32x128xf32, #tpu.memory_space<vmem>>, vector<32x128xf32>
    %cst = arith.constant dense<0.000000e+00> : vector<8x128xf32>
    %4 = tpu.matmul %0, %2, %cst {dimension_numbers = #tpu.dot_dimension_numbers<[1], [0], [0], [1], [0, 0, 1, 1], [], []>} : vector<8x32xf32>, vector<32x128xf32>, vector<8x128xf32> -> vector<8x128xf32>
    %cst_7 = arith.constant dense<0.000000e+00> : vector<8x128xf32>
    %5 = tpu.matmul %1, %3, %cst_7 {dimension_numbers = #tpu.dot_dimension_numbers<[1], [0], [0], [1], [0, 0, 1, 1], [], []>} : vector<8x32xf32>, vector<32x128xf32>, vector<8x128xf32> -> vector<8x128xf32>
    %6 = arith.subf %4, %5 : vector<8x128xf32>
    %cst_8 = arith.constant dense<0.000000e+00> : vector<8x128xf32>
    %7 = tpu.matmul %0, %3, %cst_8 {dimension_numbers = #tpu.dot_dimension_numbers<[1], [0], [0], [1], [0, 0, 1, 1], [], []>} : vector<8x32xf32>, vector<32x128xf32>, vector<8x128xf32> -> vector<8x128xf32>
    %cst_9 = arith.constant dense<0.000000e+00> : vector<8x128xf32>
    %8 = tpu.matmul %1, %2, %cst_9 {dimension_numbers = #tpu.dot_dimension_numbers<[1], [0], [0], [1], [0, 0, 1, 1], [], []>} : vector<8x32xf32>, vector<32x128xf32>, vector<8x128xf32> -> vector<8x128xf32>
    %9 = arith.addf %7, %8 : vector<8x128xf32>
    %c0_10 = arith.constant 0 : index
    %c0_11 = arith.constant 0 : index
    %10 = vector.load %arg6[%c0_10, %c0_11] : memref<1x128xf32, #tpu.memory_space<vmem>>, vector<1x128xf32>
    %11 = vector.broadcast %10 : vector<1x128xf32> to vector<8x128xf32>
    %12 = arith.addf %6, %11 : vector<8x128xf32>
    %c0_12 = arith.constant 0 : index
    %c0_13 = arith.constant 0 : index
    %13 = vector.load %arg8[%c0_12, %c0_13] : memref<8x128xf32, #tpu.memory_space<vmem>>, vector<8x128xf32>
    tpu.vector_store %arg8[%c0_12, %c0_13], %12 {strides = array<i32>} : memref<8x128xf32, #tpu.memory_space<vmem>>, vector<8x128xf32>,
    %c0_14 = arith.constant 0 : index
    %c0_15 = arith.constant 0 : index
    %14 = vector.load %arg7[%c0_14, %c0_15] : memref<1x128xf32, #tpu.memory_space<vmem>>, vector<1x128xf32>
    %15 = vector.broadcast %14 : vector<1x128xf32> to vector<8x128xf32>
    %16 = arith.addf %9, %15 : vector<8x128xf32>
    %c0_16 = arith.constant 0 : index
    %c0_17 = arith.constant 0 : index
    %17 = vector.load %arg9[%c0_16, %c0_17] : memref<8x128xf32, #tpu.memory_space<vmem>>, vector<8x128xf32>
    tpu.vector_store %arg9[%c0_16, %c0_17], %16 {strides = array<i32>} : memref<8x128xf32, #tpu.memory_space<vmem>>, vector<8x128xf32>,
    return
  }
  func.func @transform_0(%arg0: i32, %arg1: i32) -> (i32, i32) {
    %c0_i32 = arith.constant 0 : i32
    %c0_i32_0 = arith.constant 0 : i32
    return %arg0, %c0_i32 : i32, i32
  }
  func.func @transform_1(%arg0: i32, %arg1: i32) -> (i32, i32) {
    %c0_i32 = arith.constant 0 : i32
    %c0_i32_0 = arith.constant 0 : i32
    return %arg0, %c0_i32 : i32, i32
  }
  func.func @transform_2(%arg0: i32, %arg1: i32) -> (i32, i32) {
    %c0_i32 = arith.constant 0 : i32
    %c0_i32_0 = arith.constant 0 : i32
    return %c0_i32, %arg1 : i32, i32
  }
  func.func @transform_3(%arg0: i32, %arg1: i32) -> (i32, i32) {
    %c0_i32 = arith.constant 0 : i32
    %c0_i32_0 = arith.constant 0 : i32
    return %c0_i32, %arg1 : i32, i32
  }
  func.func @transform_4(%arg0: i32, %arg1: i32) -> (i32, i32) {
    %c0_i32 = arith.constant 0 : i32
    %c0_i32_0 = arith.constant 0 : i32
    return %c0_i32, %arg1 : i32, i32
  }
  func.func @transform_5(%arg0: i32, %arg1: i32) -> (i32, i32) {
    %c0_i32 = arith.constant 0 : i32
    %c0_i32_0 = arith.constant 0 : i32
    return %c0_i32, %arg1 : i32, i32
  }
  func.func @transform_6(%arg0: i32, %arg1: i32) -> (i32, i32) {
    %c0_i32 = arith.constant 0 : i32
    return %arg0, %arg1 : i32, i32
  }
  func.func @transform_7(%arg0: i32, %arg1: i32) -> (i32, i32) {
    %c0_i32 = arith.constant 0 : i32
    return %arg0, %arg1 : i32, i32
  }
}

</mosaic_0001>

<llo_original>
// kernel: complex_linear.1
$region0: #{complex_linear.1}
  #allocation0 [shape = 'u32[]', space=smem, size = 0x4, offset = 0x4, fixed_abs, tag = 'smem constant byte address 0x4 - core index']
  #allocation1 [shape = 'u32[144,128]{1,0:T(1,128)}', space=vmem, size = 0x12000, scoped, tag = 'internal scratch']
  %s0 = inlined_call_operand.vmem [shape: f32[8,32], index: 0, kind: input, shape index: {}]
  %s1 = inlined_call_operand.vmem [shape: f32[8,32], index: 1, kind: input, shape index: {}]
  %s2 = inlined_call_operand.vmem [shape: f32[32,128], index: 2, kind: input, shape index: {}]
  %s3 = inlined_call_operand.vmem [shape: f32[32,128], index: 3, kind: input, shape index: {}]
  %s4 = inlined_call_operand.vmem [shape: f32[1,128], index: 4, kind: input, shape index: {}]
  %s5 = inlined_call_operand.vmem [shape: f32[1,128], index: 5, kind: input, shape index: {}]
  %s6 = inlined_call_operand.hbm [shape: f32[8,128], index: 6, kind: output, shape index: {0}]
  %s7 = inlined_call_operand.hbm [shape: f32[8,128], index: 7, kind: output, shape index: {1}]
  %8 = xla_tuple %s6, %s7
  %s9 = sld [smem:[#allocation0]]
  $region42: #{complex_linear.1} parent=0
    _
  %s11 = ssub.s32 1, %s9
  %s12 = scalar_select 0, %s11, %s9
  $region1: #{complex_linear.1} parent=0
    #allocation2 [shape = 'u8[4096]{0}', space=vmem, size = 0x1000, scoped, tag = 'output window, operand 0, single buffered']
    #allocation3 [shape = 's32[1]{0}', space=sflag, size = 0x4, scoped, tag = 'scoped memory for complex_linear.1']
    #allocation4 [shape = 'u8[4096]{0}', space=vmem, size = 0x1000, scoped, tag = 'output window, operand 1, single buffered']
    #allocation5 [shape = 's32[1]{0}', space=sflag, size = 0x4, scoped, tag = 'scoped memory for complex_linear.1']
    %13 = vsyncpa [#allocation3], 0
    %14 = vsyncpa [#allocation5], 0
    // Predicated region
    $region2: #{complex_linear.1} parent=1 // pred_check
      _
    $region3: #{complex_linear.1} parent=1 // pred_check_branch
      %16 = sbr.rel (0) target = $region5
    $region4: #{complex_linear.1} parent=1 // pred_region
      _
    $region5: #{complex_linear.1} parent=1 // pred_fallthru
      _
    // Predicated region
    $region6: #{complex_linear.1} parent=1 // pred_check
      _
    $region7: #{complex_linear.1} parent=1 // pred_check_branch
      %18 = sbr.rel (0) target = $region9
    $region8: #{complex_linear.1} parent=1 // pred_region
      _
    $region9: #{complex_linear.1} parent=1 // pred_fallthru
      _
    // Predicated region
    $region10: #{complex_linear.1} parent=1 // pred_check
      _
    $region11: #{complex_linear.1} parent=1 // pred_check_branch
      %20 = sbr.rel (0) target = $region13
    $region12: #{complex_linear.1} parent=1 // pred_region
      _
    $region13: #{complex_linear.1} parent=1 // pred_fallthru
      _
    // Predicated region
    $region14: #{complex_linear.1} parent=1 // pred_check
      _
    $region15: #{complex_linear.1} parent=1 // pred_check_branch
      %22 = sbr.rel (0) target = $region17
    $region16: #{complex_linear.1} parent=1 // pred_region
      _
    $region17: #{complex_linear.1} parent=1 // pred_fallthru
      _
    // Predicated region
    $region18: #{complex_linear.1} parent=1 // pred_check
      _
    $region19: #{complex_linear.1} parent=1 // pred_check_branch
      %24 = sbr.rel (0) target = $region21
    $region20: #{complex_linear.1} parent=1 // pred_region
      _
    $region21: #{complex_linear.1} parent=1 // pred_fallthru
      _
    // Predicated region
    $region22: #{complex_linear.1} parent=1 // pred_check
      _
    $region23: #{complex_linear.1} parent=1 // pred_check_branch
      %26 = sbr.rel (0) target = $region25
    $region24: #{complex_linear.1} parent=1 // pred_region
      _
    $region25: #{complex_linear.1} parent=1 // pred_fallthru
      _
    %v27 = vld [vmem:[%s0] sm:$0xff]
    %v28 = vld [vmem:[%s1] sm:$0xff]
    %v29 = vld [vmem:[%s2] sm:$0xff]
    %v30 = vld [vmem:[%s2 + $0x8] sm:$0xff]
    %v31 = vld [vmem:[%s2 + $0x10] sm:$0xff]
    %v32 = vld [vmem:[%s2 + $0x18] sm:$0xff]
    %v33 = vld [vmem:[%s3] sm:$0xff]
    %v34 = vld [vmem:[%s3 + $0x8] sm:$0xff]
    %v35 = vld [vmem:[%s3 + $0x10] sm:$0xff]
    %v36 = vld [vmem:[%s3 + $0x18] sm:$0xff]
    %vm37 = vcmask 261120
    %v39 = vsel %vm37, %v27, 0
    %41 = vmatprep.subr.mxu0 0.0
    %42 = vmatpush1.msra.mxu0 0.0
    %43 = vmatprep.subr.mxu0 0.0
    %44 = vmatpush1.msra.mxu0 0.0
    %45 = vmatprep.subr.mxu0 0.0
    %46 = vmatpush1.msra.mxu0 0.0
    %47 = vmatprep.subr.mxu0 0.0
    %48 = vmatpush1.msra.mxu0 0.0
    %49 = vmatprep.subr.mxu0 0.0
    %50 = vmatpush1.msra.mxu0 0.0
    %51 = vmatprep.subr.mxu0 0.0
    %52 = vmatpush1.msra.mxu0 0.0
    %53 = vmatprep.subr.mxu0 0.0
    %54 = vmatpush1.msra.mxu0 0.0
    %55 = vmatprep.subr.mxu0 0.0
    %56 = vmatpush1.msra.mxu0 0.0
    %57 = vmatprep.subr.mxu0 0.0
    %58 = vmatpush1.msra.mxu0 0.0
    %59 = vmatprep.subr.mxu0 0.0
    %60 = vmatpush1.msra.mxu0 0.0
    %61 = vmatprep.subr.mxu0 0.0
    %62 = vmatpush1.msra.mxu0 0.0
    %63 = vmatprep.subr.mxu0 0.0
    %64 = vmatpush1.msra.mxu0 0.0
    %65 = vmatprep.subr.mxu0 0.0
    %66 = vmatpush1.msra.mxu0 %v32
    %67 = vmatprep.subr.mxu0 0.0
    %68 = vmatpush1.msra.mxu0 %v31
    %69 = vmatprep.subr.mxu0 0.0
    %70 = vmatpush1.msra.mxu0 %v30
    %71 = vmatprep.subr.mxu0 0.0
    %72 = vmatpush1.msra.mxu0 %v29
    %73 = vmatprep.subr.mxu0 0.0
    %74 = vmatpush2.msra.mxu0 0.0
    %75 = vmatprep.subr.mxu0 0.0
    %76 = vmatpush2.msra.mxu0 0.0
    %77 = vmatprep.subr.mxu0 0.0
    %78 = vmatpush2.msra.mxu0 0.0
    %79 = vmatprep.subr.mxu0 0.0
    %80 = vmatpush2.msra.mxu0 0.0
    %81 = vmatprep.subr.mxu0 0.0
    %82 = vmatpush2.msra.mxu0 0.0
    %83 = vmatprep.subr.mxu0 0.0
    %84 = vmatpush2.msra.mxu0 0.0
    %85 = vmatprep.subr.mxu0 0.0
    %86 = vmatpush2.msra.mxu0 0.0
    %87 = vmatprep.subr.mxu0 0.0
    %88 = vmatpush2.msra.mxu0 0.0
    %89 = vmatprep.subr.mxu0 0.0
    %90 = vmatpush2.msra.mxu0 0.0
    %91 = vmatprep.subr.mxu0 0.0
    %92 = vmatpush2.msra.mxu0 0.0
    %93 = vmatprep.subr.mxu0 0.0
    %94 = vmatpush2.msra.mxu0 0.0
    %95 = vmatprep.subr.mxu0 0.0
    %96 = vmatpush2.msra.mxu0 0.0
    %97 = vmatprep.subr.mxu0 0.0
    %98 = vmatpush2.msra.mxu0 0.0
    %99 = vmatprep.subr.mxu0 0.0
    %100 = vmatpush2.msra.mxu0 0.0
    %101 = vmatprep.subr.mxu0 0.0
    %102 = vmatpush2.msra.mxu0 0.0
    %103 = vmatprep.subr.mxu0 0.0
    %104 = vmatpush2.msra.mxu0 0.0
    %105 = vmatprep.mubr.f32.mxu0 0.0
    %106 = vmatmul.mubr.f32.gmra.mxu0 %v39
    %v107 = vpop.f32.mrf.mxu0
    %v108 = vadd.f32 0.0, %v107
    %v109 = vpop.f32.mrf.mxu0
    %110 = vdwg.mxu0
    %v112 = vsel %vm37, %v28, 0
    %114 = vmatprep.subr.mxu0 0.0
    %115 = vmatpush1.msra.mxu0 0.0
    %116 = vmatprep.subr.mxu0 0.0
    %117 = vmatpush1.msra.mxu0 0.0
    %118 = vmatprep.subr.mxu0 0.0
    %119 = vmatpush1.msra.mxu0 0.0
    %120 = vmatprep.subr.mxu0 0.0
    %121 = vmatpush1.msra.mxu0 0.0
    %122 = vmatprep.subr.mxu0 0.0
    %123 = vmatpush1.msra.mxu0 0.0
    %124 = vmatprep.subr.mxu0 0.0
    %125 = vmatpush1.msra.mxu0 0.0
    %126 = vmatprep.subr.mxu0 0.0
    %127 = vmatpush1.msra.mxu0 0.0
    %128 = vmatprep.subr.mxu0 0.0
    %129 = vmatpush1.msra.mxu0 0.0
    %130 = vmatprep.subr.mxu0 0.0
    %131 = vmatpush1.msra.mxu0 0.0
    %132 = vmatprep.subr.mxu0 0.0
    %133 = vmatpush1.msra.mxu0 0.0
    %134 = vmatprep.subr.mxu0 0.0
    %135 = vmatpush1.msra.mxu0 0.0
    %136 = vmatprep.subr.mxu0 0.0
    %137 = vmatpush1.msra.mxu0 0.0
    %138 = vmatprep.subr.mxu0 0.0
    %139 = vmatpush1.msra.mxu0 %v36
    %140 = vmatprep.subr.mxu0 0.0
    %141 = vmatpush1.msra.mxu0 %v35
    %142 = vmatprep.subr.mxu0 0.0
    %143 = vmatpush1.msra.mxu0 %v34
    %144 = vmatprep.subr.mxu0 0.0
    %145 = vmatpush1.msra.mxu0 %v33
    %146 = vmatprep.subr.mxu0 0.0
    %147 = vmatpush2.msra.mxu0 0.0
    %148 = vmatprep.subr.mxu0 0.0
    %149 = vmatpush2.msra.mxu0 0.0
    %150 = vmatprep.subr.mxu0 0.0
    %151 = vmatpush2.msra.mxu0 0.0
    %152 = vmatprep.subr.mxu0 0.0
    %153 = vmatpush2.msra.mxu0 0.0
    %154 = vmatprep.subr.mxu0 0.0
    %155 = vmatpush2.msra.mxu0 0.0
    %156 = vmatprep.subr.mxu0 0.0
    %157 = vmatpush2.msra.mxu0 0.0
    %158 = vmatprep.subr.mxu0 0.0
    %159 = vmatpush2.msra.mxu0 0.0
    %160 = vmatprep.subr.mxu0 0.0
    %161 = vmatpush2.msra.mxu0 0.0
    %162 = vmatprep.subr.mxu0 0.0
    %163 = vmatpush2.msra.mxu0 0.0
    %164 = vmatprep.subr.mxu0 0.0
    %165 = vmatpush2.msra.mxu0 0.0
    %166 = vmatprep.subr.mxu0 0.0
    %167 = vmatpush2.msra.mxu0 0.0
    %168 = vmatprep.subr.mxu0 0.0
    %169 = vmatpush2.msra.mxu0 0.0
    %170 = vmatprep.subr.mxu0 0.0
    %171 = vmatpush2.msra.mxu0 0.0
    %172 = vmatprep.subr.mxu0 0.0
    %173 = vmatpush2.msra.mxu0 0.0
    %174 = vmatprep.subr.mxu0 0.0
    %175 = vmatpush2.msra.mxu0 0.0
    %176 = vmatprep.subr.mxu0 0.0
    %177 = vmatpush2.msra.mxu0 0.0
    %178 = vmatprep.mubr.f32.mxu0 0.0
    %179 = vmatmul.mubr.f32.gmra.mxu0 %v112
    %v180 = vpop.f32.mrf.mxu0
    %v181 = vadd.f32 0.0, %v180
    %v182 = vpop.f32.mrf.mxu0
    %183 = vdwg.mxu0
    %v184 = vsub.f32 %v108, %v181
    %185 = vmatprep.subr.mxu0 0.0
    %186 = vmatpush1.msra.mxu0 0.0
    %187 = vmatprep.subr.mxu0 0.0
    %188 = vmatpush1.msra.mxu0 0.0
    %189 = vmatprep.subr.mxu0 0.0
    %190 = vmatpush1.msra.mxu0 0.0
    %191 = vmatprep.subr.mxu0 0.0
    %192 = vmatpush1.msra.mxu0 0.0
    %193 = vmatprep.subr.mxu0 0.0
    %194 = vmatpush1.msra.mxu0 0.0
    %195 = vmatprep.subr.mxu0 0.0
    %196 = vmatpush1.msra.mxu0 0.0
    %197 = vmatprep.subr.mxu0 0.0
    %198 = vmatpush1.msra.mxu0 0.0
    %199 = vmatprep.subr.mxu0 0.0
    %200 = vmatpush1.msra.mxu0 0.0
    %201 = vmatprep.subr.mxu0 0.0
    %202 = vmatpush1.msra.mxu0 0.0
    %203 = vmatprep.subr.mxu0 0.0
    %204 = vmatpush1.msra.mxu0 0.0
    %205 = vmatprep.subr.mxu0 0.0
    %206 = vmatpush1.msra.mxu0 0.0
    %207 = vmatprep.subr.mxu0 0.0
    %208 = vmatpush1.msra.mxu0 0.0
    %209 = vmatprep.subr.mxu0 0.0
    %210 = vmatpush1.msra.mxu0 %v32
    %211 = vmatprep.subr.mxu0 0.0
    %212 = vmatpush1.msra.mxu0 %v31
    %213 = vmatprep.subr.mxu0 0.0
    %214 = vmatpush1.msra.mxu0 %v30
    %215 = vmatprep.subr.mxu0 0.0
    %216 = vmatpush1.msra.mxu0 %v29
    %217 = vmatprep.subr.mxu0 0.0
    %218 = vmatpush2.msra.mxu0 0.0
    %219 = vmatprep.subr.mxu0 0.0
    %220 = vmatpush2.msra.mxu0 0.0
    %221 = vmatprep.subr.mxu0 0.0
    %222 = vmatpush2.msra.mxu0 0.0
    %223 = vmatprep.subr.mxu0 0.0
    %224 = vmatpush2.msra.mxu0 0.0
    %225 = vmatprep.subr.mxu0 0.0
    %226 = vmatpush2.msra.mxu0 0.0
    %227 = vmatprep.subr.mxu0 0.0
    %228 = vmatpush2.msra.mxu0 0.0
    %229 = vmatprep.subr.mxu0 0.0
    %230 = vmatpush2.msra.mxu0 0.0
    %231 = vmatprep.subr.mxu0 0.0
    %232 = vmatpush2.msra.mxu0 0.0
    %233 = vmatprep.subr.mxu0 0.0
    %234 = vmatpush2.msra.mxu0 0.0
    %235 = vmatprep.subr.mxu0 0.0
    %236 = vmatpush2.msra.mxu0 0.0
    %237 = vmatprep.subr.mxu0 0.0
    %238 = vmatpush2.msra.mxu0 0.0
    %239 = vmatprep.subr.mxu0 0.0
    %240 = vmatpush2.msra.mxu0 0.0
    %241 = vmatprep.subr.mxu0 0.0
    %242 = vmatpush2.msra.mxu0 0.0
    %243 = vmatprep.subr.mxu0 0.0
    %244 = vmatpush2.msra.mxu0 0.0
    %245 = vmatprep.subr.mxu0 0.0
    %246 = vmatpush2.msra.mxu0 0.0
    %247 = vmatprep.subr.mxu0 0.0
    %248 = vmatpush2.msra.mxu0 0.0
    %249 = vmatprep.mubr.f32.mxu0 0.0
    %250 = vmatmul.mubr.f32.gmra.mxu0 %v112
    %v251 = vpop.f32.mrf.mxu0
    %v252 = vadd.f32 0.0, %v251
    %v253 = vpop.f32.mrf.mxu0
    %254 = vdwg.mxu0
    %255 = vmatprep.subr.mxu0 0.0
    %256 = vmatpush1.msra.mxu0 0.0
    %257 = vmatprep.subr.mxu0 0.0
    %258 = vmatpush1.msra.mxu0 0.0
    %259 = vmatprep.subr.mxu0 0.0
    %260 = vmatpush1.msra.mxu0 0.0
    %261 = vmatprep.subr.mxu0 0.0
    %262 = vmatpush1.msra.mxu0 0.0
    %263 = vmatprep.subr.mxu0 0.0
    %264 = vmatpush1.msra.mxu0 0.0
    %265 = vmatprep.subr.mxu0 0.0
    %266 = vmatpush1.msra.mxu0 0.0
    %267 = vmatprep.subr.mxu0 0.0
    %268 = vmatpush1.msra.mxu0 0.0
    %269 = vmatprep.subr.mxu0 0.0
    %270 = vmatpush1.msra.mxu0 0.0
    %271 = vmatprep.subr.mxu0 0.0
    %272 = vmatpush1.msra.mxu0 0.0
    %273 = vmatprep.subr.mxu0 0.0
    %274 = vmatpush1.msra.mxu0 0.0
    %275 = vmatprep.subr.mxu0 0.0
    %276 = vmatpush1.msra.mxu0 0.0
    %277 = vmatprep.subr.mxu0 0.0
    %278 = vmatpush1.msra.mxu0 0.0
    %279 = vmatprep.subr.mxu0 0.0
    %280 = vmatpush1.msra.mxu0 %v36
    %281 = vmatprep.subr.mxu0 0.0
    %282 = vmatpush1.msra.mxu0 %v35
    %283 = vmatprep.subr.mxu0 0.0
    %284 = vmatpush1.msra.mxu0 %v34
    %285 = vmatprep.subr.mxu0 0.0
    %286 = vmatpush1.msra.mxu0 %v33
    %287 = vmatprep.subr.mxu0 0.0
    %288 = vmatpush2.msra.mxu0 0.0
    %289 = vmatprep.subr.mxu0 0.0
    %290 = vmatpush2.msra.mxu0 0.0
    %291 = vmatprep.subr.mxu0 0.0
    %292 = vmatpush2.msra.mxu0 0.0
    %293 = vmatprep.subr.mxu0 0.0
    %294 = vmatpush2.msra.mxu0 0.0
    %295 = vmatprep.subr.mxu0 0.0
    %296 = vmatpush2.msra.mxu0 0.0
    %297 = vmatprep.subr.mxu0 0.0
    %298 = vmatpush2.msra.mxu0 0.0
    %299 = vmatprep.subr.mxu0 0.0
    %300 = vmatpush2.msra.mxu0 0.0
    %301 = vmatprep.subr.mxu0 0.0
    %302 = vmatpush2.msra.mxu0 0.0
    %303 = vmatprep.subr.mxu0 0.0
    %304 = vmatpush2.msra.mxu0 0.0
    %305 = vmatprep.subr.mxu0 0.0
    %306 = vmatpush2.msra.mxu0 0.0
    %307 = vmatprep.subr.mxu0 0.0
    %308 = vmatpush2.msra.mxu0 0.0
    %309 = vmatprep.subr.mxu0 0.0
    %310 = vmatpush2.msra.mxu0 0.0
    %311 = vmatprep.subr.mxu0 0.0
    %312 = vmatpush2.msra.mxu0 0.0
    %313 = vmatprep.subr.mxu0 0.0
    %314 = vmatpush2.msra.mxu0 0.0
    %315 = vmatprep.subr.mxu0 0.0
    %316 = vmatpush2.msra.mxu0 0.0
    %317 = vmatprep.subr.mxu0 0.0
    %318 = vmatpush2.msra.mxu0 0.0
    %319 = vmatprep.mubr.f32.mxu0 0.0
    %320 = vmatmul.mubr.f32.gmra.mxu0 %v39
    %v321 = vpop.f32.mrf.mxu0
    %v322 = vadd.f32 %v252, %v321
    %v323 = vpop.f32.mrf.mxu0
    %324 = vdwg.mxu0
    %v325 = vld [vmem:[%s4] sm:$0x1]
    %v327 = vlaneseq
    %v328 = vshrl.u32 %v327, 7
    %v329 = vsub.s32 0, %v328
    %v330 = vrot.slane %v325, %v329
    %v332 = vadd.f32 %v184, %v330
    %333 = vst [vmem:[#allocation2] sm:$0xff] %v332
    %v334 = vld [vmem:[%s5] sm:$0x1]
    %v336 = vlaneseq
    %v337 = vshrl.u32 %v336, 7
    %v338 = vsub.s32 0, %v337
    %v339 = vrot.slane %v334, %v338
    %v341 = vadd.f32 %v322, %v339
    %342 = vst [vmem:[#allocation4] sm:$0xff] %v341
    // Predicated region
    $region26: #{complex_linear.1} parent=1 // pred_check
      _
    $region27: #{complex_linear.1} parent=1 // pred_check_branch
      %344 = sbr.rel (0) target = $region29
    $region28: #{complex_linear.1} parent=1 // pred_region
      %s346 = ssub.s32 128, 128
      %347 = vsyncadd [#allocation3], %s346
      %s349 = sshll.u32 [#allocation2], 4
      %s350 = int_to_ptr.vmem [resolvable:$true] %s349
      %352 = dma.vmem_to_hbm [thread:$0]  %s350, 128, %s6, [#allocation3]
    $region29: #{complex_linear.1} parent=1 // pred_fallthru
      _
    // Predicated region
    $region30: #{complex_linear.1} parent=1 // pred_check
      _
    $region31: #{complex_linear.1} parent=1 // pred_check_branch
      %354 = sbr.rel (0) target = $region33
    $region32: #{complex_linear.1} parent=1 // pred_region
      %s356 = ssub.s32 128, 128
      %357 = vsyncadd [#allocation5], %s356
      %s359 = sshll.u32 [#allocation4], 4
      %s360 = int_to_ptr.vmem [resolvable:$true] %s359
      %362 = dma.vmem_to_hbm [thread:$0]  %s360, 128, %s7, [#allocation5]
    $region33: #{complex_linear.1} parent=1 // pred_fallthru
      _
    // Predicated region
    $region34: #{complex_linear.1} parent=1 // pred_check
      _
    $region35: #{complex_linear.1} parent=1 // pred_check_branch
      %364 = sbr.rel (0) target = $region37
    $region36: #{complex_linear.1} parent=1 // pred_region
      %365 = dma.done [#allocation3], 128
    $region37: #{complex_linear.1} parent=1 // pred_fallthru
      _
    // Predicated region
    $region38: #{complex_linear.1} parent=1 // pred_check
      _
    $region39: #{complex_linear.1} parent=1 // pred_check_branch
      %367 = sbr.rel (0) target = $region41
    $region40: #{complex_linear.1} parent=1 // pred_region
      %368 = dma.done [#allocation5], 128
    $region41: #{complex_linear.1} parent=1 // pred_fallthru
      _
    %369 = vsyncpa [#allocation3], 1
    %370 = vsyncpa [#allocation5], 1

</llo_original>
